<compile_context>
chip_gen: v6e
topology: v6e:2x2x1
jax: 0.10.0
libtpu: 0.0.40
codegen_flags: <defaults>
</compile_context>

<pallas_src>
import functools
import math

import jax
import jax.numpy as jnp
from jax import lax
from jax.experimental import pallas as pl
from jax.experimental.pallas import tpu as pltpu

F32 = jnp.float32
BF16 = jnp.bfloat16
_VMEM_LIMIT = 48 * 1024 * 1024  # < 64 MiB (v7x physical), well under v5e/v6e 128 MiB


def _gelu_tanh(y):
    # TODO(synk): HF bert-base-uncased uses the exact erf GELU; tanh approx differs slightly.
    return 0.5 * y * (1.0 + jnp.tanh(0.7978845608028654 * (y + 0.044715 * y * y * y)))


def _pick_tile(M, cap=512):
    for t in (cap, 256, 128, 64, 32, 16, 8):
        if t <= M and M % t == 0:
            return t
    return M


# --------------------------- weight-resident fused linear kernels ------------

def _linear_kernel(x_ref, w_ref, b_ref, o_ref, *, activation):
    y = jnp.dot(x_ref[...], w_ref[...],
                preferred_element_type=jnp.float32) + b_ref[...]
    if activation == "gelu":
        y = _gelu_tanh(y)
    o_ref[...] = y.astype(o_ref.dtype)


def _linear_res_ln_kernel(x_ref, w_ref, b_ref, r_ref, g_ref, bt_ref, o_ref, *, eps):
    h = (jnp.dot(x_ref[...], w_ref[...], preferred_element_type=jnp.float32)
         + b_ref[...] + r_ref[...].astype(jnp.float32))
    mu = jnp.mean(h, axis=-1, keepdims=True)
    var = jnp.mean((h - mu) * (h - mu), axis=-1, keepdims=True)
    inv = lax.rsqrt(var + eps)
    o_ref[...] = ((h - mu) * inv * g_ref[...] + bt_ref[...]).astype(o_ref.dtype)


def linear(x, w, b, *, activation="none", out_dtype=BF16, tm=512, tn=None):
    """y = act(x @ w + b).

    Full-K contraction per grid step (no accumulator).  Grid is (N//tn, M//tm) with M
    innermost and the weight index_map independent of M, so the (K, tn) weight strip is
    fetched from HBM once and stays resident in VMEM across the whole M sweep.
    """
    M, K = x.shape
    N = w.shape[1]
    tm = _pick_tile(M, tm)
    if tn is None:
        tn = N  # whole weight resident; fine for all BERT-base projection/FFN sizes
    assert M % tm == 0 and N % tn == 0
    return pl.pallas_call(
        functools.partial(_linear_kernel, activation=activation),
        out_shape=jax.ShapeDtypeStruct((M, N), out_dtype),
        grid_spec=pltpu.PrefetchScalarGridSpec(
            num_scalar_prefetch=0,
            grid=(N // tn, M // tm),  # M is the innermost (fastest) axis
            in_specs=[
                pl.BlockSpec((tm, K), lambda j, i: (i, 0)),
                pl.BlockSpec((K, tn), lambda j, i: (0, j)),  # independent of i -> resident
                pl.BlockSpec((1, tn), lambda j, i: (0, j)),
            ],
            out_specs=pl.BlockSpec((tm, tn), lambda j, i: (i, j))),
        compiler_params=pltpu.CompilerParams(
            dimension_semantics=("parallel", "parallel"),
            vmem_limit_bytes=_VMEM_LIMIT),
    )(x, w, b.reshape(1, N))


def linear_res_ln(x, w, b, residual, gamma, beta, *, out_dtype=BF16, tm=512, eps=1e-12):
    """y = LayerNorm(x @ w + b + residual).  N untiled (LN needs the full row);
    the (K, N) weight is VMEM-resident across the M sweep."""
    M, K = x.shape
    N = w.shape[1]
    tm = _pick_tile(M, tm)
    assert M % tm == 0
    return pl.pallas_call(
        functools.partial(_linear_res_ln_kernel, eps=eps),
        out_shape=jax.ShapeDtypeStruct((M, N), out_dtype),
        grid_spec=pltpu.PrefetchScalarGridSpec(
            num_scalar_prefetch=0,
            grid=(M // tm,),
            in_specs=[
                pl.BlockSpec((tm, K), lambda i: (i, 0)),
                pl.BlockSpec((K, N), lambda i: (0, 0)),   # resident
                pl.BlockSpec((1, N), lambda i: (0, 0)),
                pl.BlockSpec((tm, N), lambda i: (i, 0)),
                pl.BlockSpec((1, N), lambda i: (0, 0)),
                pl.BlockSpec((1, N), lambda i: (0, 0)),
            ],
            out_specs=pl.BlockSpec((tm, N), lambda i: (i, 0))),
        compiler_params=pltpu.CompilerParams(
            dimension_semantics=("parallel",),
            vmem_limit_bytes=_VMEM_LIMIT),
    )(x, w, b.reshape(1, N), residual, gamma, beta)


# --------------------------- fused embedding sum + LayerNorm -----------------

def _embed_ln_kernel(we_ref, pe_ref, te_ref, g_ref, b_ref, o_ref, *, eps):
    h = (we_ref[0].astype(jnp.float32) + pe_ref[...].astype(jnp.float32)
         + te_ref[0].astype(jnp.float32))
    mu = jnp.mean(h, axis=-1, keepdims=True)
    var = jnp.mean((h - mu) * (h - mu), axis=-1, keepdims=True)
    inv = lax.rsqrt(var + eps)
    o_ref[0] = ((h - mu) * inv * g_ref[...] + b_ref[...]).astype(o_ref.dtype)


def embed_layernorm(we, pe, te, gamma, beta, *, out_dtype=BF16, eps=1e-12):
    """LayerNorm(word_emb + pos_emb + type_emb), summed inside the kernel so no f32
    (B, S, H) intermediate round-trips through HBM."""
    B, S, H = we.shape
    out = pl.pallas_call(
        functools.partial(_embed_ln_kernel, eps=eps),
        out_shape=jax.ShapeDtypeStruct((B, S, H), out_dtype),
        grid_spec=pltpu.PrefetchScalarGridSpec(
            num_scalar_prefetch=0,
            grid=(B,),
            in_specs=[
                pl.BlockSpec((1, S, H), lambda b: (b, 0, 0)),
                pl.BlockSpec((S, H), lambda b: (0, 0)),      # resident across batch
                pl.BlockSpec((1, S, H), lambda b: (b, 0, 0)),
                pl.BlockSpec((1, H), lambda b: (0, 0)),
                pl.BlockSpec((1, H), lambda b: (0, 0)),
            ],
            out_specs=pl.BlockSpec((1, S, H), lambda b: (b, 0, 0))),
        compiler_params=pltpu.CompilerParams(
            dimension_semantics=("parallel",),
            vmem_limit_bytes=_VMEM_LIMIT),
    )(we, pe, te, gamma, beta)
    return out.reshape(B * S, H)


# --------------------------- attention ---------------------------------------

def _attention_kernel(qkv_ref, mask_ref, o_ref, ctx_ref, *, num_heads, head_dim):
    # One batch element per grid step.  Heads are sliced on the lane axis of the fused
    # QKV tile (scale already folded into the Q weights).  QK^T contracts the last dims
    # via dot_general (no explicit K transpose); each head's context is written into the
    # (S, H) f32 scratch slab as soon as it is computed so per-head live ranges stay
    # bounded; the final (S, H) store is a single lane-dense tile.
    H = num_heads * head_dim
    qkv = qkv_ref[0]                                        # (S, 3H) bf16
    m = mask_ref[0]                                         # (1, S) additive mask, f32
    for h in range(num_heads):
        q = qkv[:, h * head_dim:(h + 1) * head_dim]                       # (S, hd)
        k = qkv[:, H + h * head_dim:H + (h + 1) * head_dim]               # (S, hd)
        v = qkv[:, 2 * H + h * head_dim:2 * H + (h + 1) * head_dim]       # (S, hd)
        s = lax.dot_general(q, k, (((1,), (1,)), ((), ())),
                            preferred_element_type=jnp.float32) + m       # (S, S)
        s = s - jnp.max(s, axis=-1, keepdims=True)
        p = jnp.exp(s)
        p = p * pl.reciprocal(jnp.sum(p, axis=-1, keepdims=True), approx=True)
        ctx_ref[:, h * head_dim:(h + 1) * head_dim] = jnp.dot(
            p.astype(jnp.bfloat16), v, preferred_element_type=jnp.float32)  # (S, hd)
    o_ref[0] = ctx_ref[...].astype(o_ref.dtype)
    # TODO(synk): for long sequences switch to online-softmax tiling over the key axis.


def attention(qkv, mask_add, *, num_heads, head_dim):
    B, S, H3 = qkv.shape
    H = H3 // 3
    mask3 = mask_add.reshape(B, 1, S)
    return pl.pallas_call(
        functools.partial(_attention_kernel, num_heads=num_heads, head_dim=head_dim),
        out_shape=jax.ShapeDtypeStruct((B, S, H), BF16),
        grid_spec=pltpu.PrefetchScalarGridSpec(
            num_scalar_prefetch=0,
            grid=(B,),
            in_specs=[
                pl.BlockSpec((1, S, H3), lambda b: (b, 0, 0)),
                pl.BlockSpec((1, 1, S), lambda b: (b, 0, 0)),
            ],
            out_specs=pl.BlockSpec((1, S, H), lambda b: (b, 0, 0)),
            scratch_shapes=[pltpu.VMEM((S, H), jnp.float32)]),
        compiler_params=pltpu.CompilerParams(
            dimension_semantics=("parallel",),
            vmem_limit_bytes=_VMEM_LIMIT),
    )(qkv, mask3)


# --------------------------- pooler + classifier head (fused) ----------------

def _pooler_head_kernel(cls_ref, pw_ref, pb_ref, ow_ref, ob_ref, o_ref):
    pooled = jnp.tanh(
        jnp.dot(cls_ref[...], pw_ref[...], preferred_element_type=jnp.float32)
        + pb_ref[...])
    # self.bert_drop = nn.Dropout(0.3): identity at inference time.
    # TODO(synk): training-mode dropout (stochastic mask via pltpu.prng_*) not implemented.
    logits = jnp.dot(pooled.astype(jnp.bfloat16), ow_ref[...],
                     preferred_element_type=jnp.float32) + ob_ref[...]
    o_ref[...] = logits.astype(o_ref.dtype)


def pooler_head(cls, pool_w, pool_b, out_w, out_b):
    B, H = cls.shape
    return pl.pallas_call(
        _pooler_head_kernel,
        out_shape=jax.ShapeDtypeStruct((B, 1), jnp.float32),
        in_specs=[
            pl.BlockSpec((B, H), lambda: (0, 0)),
            pl.BlockSpec((H, H), lambda: (0, 0)),
            pl.BlockSpec((1, H), lambda: (0, 0)),
            pl.BlockSpec((H, 1), lambda: (0, 0)),
            pl.BlockSpec((1, 1), lambda: (0, 0)),
        ],
        out_specs=pl.BlockSpec((B, 1), lambda: (0, 0)),
        compiler_params=pltpu.CompilerParams(vmem_limit_bytes=_VMEM_LIMIT),
    )(cls, pool_w, pool_b.reshape(1, H), out_w, out_b.reshape(1, 1))


# --------------------------- parameters --------------------------------------

def init_params(key, *, vocab, type_vocab, max_pos, hidden, num_heads,
                intermediate, num_layers):
    it = iter(jax.random.split(key, 8 + num_layers * 8))

    def w(shape, dtype=BF16, scale=0.02):
        return (scale * jax.random.normal(next(it), shape)).astype(dtype)

    q_scale = 1.0 / math.sqrt(hidden // num_heads)

    params = {
        "word_emb": w((vocab, hidden), F32),
        "pos_emb": w((max_pos, hidden), F32),
        "type_emb": w((type_vocab, hidden), F32),
        "emb_ln_g": jnp.ones((1, hidden), F32),
        "emb_ln_b": jnp.zeros((1, hidden), F32),
        "layers": [],
        "pool_w": w((hidden, hidden)),
        "pool_b": jnp.zeros((hidden,), F32),
        "out_w": w((hidden, 1)),
        "out_b": jnp.zeros((1,), F32),
    }
    for _ in range(num_layers):
        # Fused QKV projection: wq|wk|wv concatenated along the output (lane) axis.
        # The 1/sqrt(head_dim) attention scale is folded into the Q columns (one-time
        # weight transform; the in-kernel per-token multiply is gone).
        w_qkv = w((hidden, 3 * hidden))
        w_qkv = w_qkv.at[:, :hidden].multiply(q_scale)
        b_qkv = jnp.zeros((3 * hidden,), F32).at[:hidden].multiply(q_scale)
        params["layers"].append({
            "w_qkv": w_qkv, "b_qkv": b_qkv,
            "wo": w((hidden, hidden)), "bo": jnp.zeros((hidden,), F32),
            "ln1_g": jnp.ones((1, hidden), F32), "ln1_b": jnp.zeros((1, hidden), F32),
            "w1": w((hidden, intermediate)), "b1": jnp.zeros((intermediate,), F32),
            "w2": w((intermediate, hidden)), "b2": jnp.zeros((hidden,), F32),
            "ln2_g": jnp.ones((1, hidden), F32), "ln2_b": jnp.zeros((1, hidden), F32),
        })
    return params


# --------------------------- forward pass -------------------------------------

def bert_base_uncased_forward(params, ids, mask, token_type_ids, *, num_heads):
    B, S = ids.shape
    H = params["word_emb"].shape[1]
    hd = H // num_heads

    # Embedding lookups are data-dependent gathers -> plain JAX glue; the sum + LN is
    # fused in one Pallas kernel (no f32 (B,S,H) intermediate in HBM).
    we = params["word_emb"][ids]                       # (B, S, H) f32
    te = params["type_emb"][token_type_ids]            # (B, S, H) f32
    pe = params["pos_emb"][:S]                         # (S, H)    f32
    x = embed_layernorm(we, pe, te, params["emb_ln_g"], params["emb_ln_b"])  # bf16 (B*S, H)

    # Additive attention mask: 0 for valid tokens, -1e4 for padding (un-replicated).
    mask_add = (1.0 - mask.astype(F32)) * -10000.0                           # (B, S)

    for layer in params["layers"]:
        qkv = linear(x, layer["w_qkv"], layer["b_qkv"])                      # (B*S, 3H)
        ctx = attention(qkv.reshape(B, S, 3 * H), mask_add,
                        num_heads=num_heads, head_dim=hd)
        x = linear_res_ln(ctx.reshape(B * S, H), layer["wo"], layer["bo"],
                          x, layer["ln1_g"], layer["ln1_b"])
        ff = linear(x, layer["w1"], layer["b1"], activation="gelu")
        x = linear_res_ln(ff, layer["w2"], layer["b2"],
                          x, layer["ln2_g"], layer["ln2_b"])

    # BERT pooler (dense + tanh on [CLS]) fused with Dropout(identity) + Linear(H, 1).
    cls = x.reshape(B, S, H)[:, 0, :]                                        # (B, H)
    logits = pooler_head(cls, params["pool_w"], params["pool_b"],
                         params["out_w"], params["out_b"])                   # (B, 1) f32
    return logits


# --------------------------- main ---------------------------------------------

if __name__ == "__main__":
    B, S = 2, 8
    cfg = dict(vocab=100, type_vocab=2, max_pos=64, hidden=32,
               num_heads=2, intermediate=64, num_layers=2)

    key = jax.random.PRNGKey(0)
    pkey, ikey = jax.random.split(key)
    params = init_params(pkey, **cfg)

    ids = jax.random.randint(ikey, (B, S), 0, cfg["vocab"], dtype=jnp.int32)
    mask = jnp.ones((B, S), jnp.int32).at[1, 6:].set(0)   # pad tail of 2nd sequence
    token_type_ids = jnp.zeros((B, S), jnp.int32)

    out = bert_base_uncased_forward(params, ids, mask, token_type_ids,
                                    num_heads=cfg["num_heads"])
    out = jax.block_until_ready(out)
    assert out.shape == (B, 1) and out.dtype == jnp.float32
    print("KERNEL_OK")
</pallas_src>

<mosaic_0001>
module attributes {stable_mosaic.version = 11 : i64} {
  func.func @_embed_ln_kernel(%arg0: i32, %arg1: memref<1x8x32xf32, #tpu.memory_space<vmem>>, %arg2: memref<8x32xf32, #tpu.memory_space<vmem>>, %arg3: memref<1x8x32xf32, #tpu.memory_space<vmem>>, %arg4: memref<1x32xf32, #tpu.memory_space<vmem>>, %arg5: memref<1x32xf32, #tpu.memory_space<vmem>>, %arg6: memref<1x8x32xbf16, #tpu.memory_space<vmem>>) attributes {dimension_semantics = [#tpu.dimension_semantics<parallel>], iteration_bounds = array<i64: 2>, scalar_prefetch = 0 : i64, scratch_operands = 0 : i64, tpu.core_type = #tpu.core_type<tc>, window_params = [{transform_indices = @transform_0, window_bounds = array<i64: 1, 8, 32>}, {pipeline_mode = #tpu.pipeline_mode<synchronous>, transform_indices = @transform_1, window_bounds = array<i64: 8, 32>}, {transform_indices = @transform_2, window_bounds = array<i64: 1, 8, 32>}, {pipeline_mode = #tpu.pipeline_mode<synchronous>, transform_indices = @transform_3, window_bounds = array<i64: 1, 32>}, {pipeline_mode = #tpu.pipeline_mode<synchronous>, transform_indices = @transform_4, window_bounds = array<i64: 1, 32>}, {transform_indices = @transform_5, window_bounds = array<i64: 1, 8, 32>}]} {
    %c0 = arith.constant 0 : index
    %c0_0 = arith.constant 0 : index
    %c0_1 = arith.constant 0 : index
    %0 = vector.load %arg1[%c0, %c0_0, %c0_1] : memref<1x8x32xf32, #tpu.memory_space<vmem>>, vector<1x8x32xf32>
    %1 = vector.shape_cast %0 : vector<1x8x32xf32> to vector<8x32xf32>
    %c0_2 = arith.constant 0 : index
    %c0_3 = arith.constant 0 : index
    %2 = vector.load %arg2[%c0_2, %c0_3] : memref<8x32xf32, #tpu.memory_space<vmem>>, vector<8x32xf32>
    %3 = arith.addf %1, %2 : vector<8x32xf32>
    %c0_4 = arith.constant 0 : index
    %c0_5 = arith.constant 0 : index
    %c0_6 = arith.constant 0 : index
    %4 = vector.load %arg3[%c0_4, %c0_5, %c0_6] : memref<1x8x32xf32, #tpu.memory_space<vmem>>, vector<1x8x32xf32>
    %5 = vector.shape_cast %4 : vector<1x8x32xf32> to vector<8x32xf32>
    %6 = arith.addf %3, %5 : vector<8x32xf32>
    %cst = arith.constant dense<0.000000e+00> : vector<8xf32>
    %7 = vector.multi_reduction <add>, %6, %cst [1] : vector<8x32xf32> to vector<8xf32>
    %8 = vector.shape_cast %7 : vector<8xf32> to vector<8x1xf32>
    %cst_7 = arith.constant 3.200000e+01 : f32
    %9 = vector.broadcast %cst_7 : f32 to vector<8x1xf32>
    %10 = arith.divf %8, %9 : vector<8x1xf32>
    %11 = vector.broadcast %10 : vector<8x1xf32> to vector<8x32xf32>
    %12 = arith.subf %6, %11 : vector<8x32xf32>
    %13 = vector.broadcast %10 : vector<8x1xf32> to vector<8x32xf32>
    %14 = arith.subf %6, %13 : vector<8x32xf32>
    %15 = arith.mulf %12, %14 : vector<8x32xf32>
    %cst_8 = arith.constant dense<0.000000e+00> : vector<8xf32>
    %16 = vector.multi_reduction <add>, %15, %cst_8 [1] : vector<8x32xf32> to vector<8xf32>
    %17 = vector.shape_cast %16 : vector<8xf32> to vector<8x1xf32>
    %cst_9 = arith.constant 3.200000e+01 : f32
    %18 = vector.broadcast %cst_9 : f32 to vector<8x1xf32>
    %19 = arith.divf %17, %18 : vector<8x1xf32>
    %cst_10 = arith.constant 9.99999996E-13 : f32
    %20 = vector.broadcast %cst_10 : f32 to vector<8x1xf32>
    %21 = arith.addf %19, %20 : vector<8x1xf32>
    %22 = math.rsqrt %21 : vector<8x1xf32>
    %23 = vector.broadcast %10 : vector<8x1xf32> to vector<8x32xf32>
    %24 = arith.subf %6, %23 : vector<8x32xf32>
    %25 = vector.broadcast %22 : vector<8x1xf32> to vector<8x32xf32>
    %26 = arith.mulf %24, %25 : vector<8x32xf32>
    %c0_11 = arith.constant 0 : index
    %c0_12 = arith.constant 0 : index
    %27 = vector.load %arg4[%c0_11, %c0_12] : memref<1x32xf32, #tpu.memory_space<vmem>>, vector<1x32xf32>
    %28 = vector.broadcast %27 : vector<1x32xf32> to vector<8x32xf32>
    %29 = arith.mulf %26, %28 : vector<8x32xf32>
    %c0_13 = arith.constant 0 : index
    %c0_14 = arith.constant 0 : index
    %30 = vector.load %arg5[%c0_13, %c0_14] : memref<1x32xf32, #tpu.memory_space<vmem>>, vector<1x32xf32>
    %31 = vector.broadcast %30 : vector<1x32xf32> to vector<8x32xf32>
    %32 = arith.addf %29, %31 : vector<8x32xf32>
    %33 = arith.truncf %32 : vector<8x32xf32> to vector<8x32xbf16>
    %c0_15 = arith.constant 0 : index
    %c0_16 = arith.constant 0 : index
    %c0_17 = arith.constant 0 : index
    %34 = vector.load %arg6[%c0_15, %c0_16, %c0_17] : memref<1x8x32xbf16, #tpu.memory_space<vmem>>, vector<1x8x32xbf16>
    %35 = vector.shape_cast %34 : vector<1x8x32xbf16> to vector<8x32xbf16>
    %36 = vector.shape_cast %33 : vector<8x32xbf16> to vector<1x8x32xbf16>
    tpu.vector_store %arg6[%c0_15, %c0_16, %c0_17], %36 {strides = array<i32>} : memref<1x8x32xbf16, #tpu.memory_space<vmem>>, vector<1x8x32xbf16>,
    return
  }
  func.func @transform_0(%arg0: i32) -> (i32, i32, i32) {
    %c0_i32 = arith.constant 0 : i32
    %c0_i32_0 = arith.constant 0 : i32
    %c0_i32_1 = arith.constant 0 : i32
    return %arg0, %c0_i32, %c0_i32_0 : i32, i32, i32
  }
  func.func @transform_1(%arg0: i32) -> (i32, i32) {
    %c0_i32 = arith.constant 0 : i32
    %c0_i32_0 = arith.constant 0 : i32
    %c0_i32_1 = arith.constant 0 : i32
    return %c0_i32, %c0_i32_0 : i32, i32
  }
  func.func @transform_2(%arg0: i32) -> (i32, i32, i32) {
    %c0_i32 = arith.constant 0 : i32
    %c0_i32_0 = arith.constant 0 : i32
    %c0_i32_1 = arith.constant 0 : i32
    return %arg0, %c0_i32, %c0_i32_0 : i32, i32, i32
  }
  func.func @transform_3(%arg0: i32) -> (i32, i32) {
    %c0_i32 = arith.constant 0 : i32
    %c0_i32_0 = arith.constant 0 : i32
    %c0_i32_1 = arith.constant 0 : i32
    return %c0_i32, %c0_i32_0 : i32, i32
  }
  func.func @transform_4(%arg0: i32) -> (i32, i32) {
    %c0_i32 = arith.constant 0 : i32
    %c0_i32_0 = arith.constant 0 : i32
    %c0_i32_1 = arith.constant 0 : i32
    return %c0_i32, %c0_i32_0 : i32, i32
  }
  func.func @transform_5(%arg0: i32) -> (i32, i32, i32) {
    %c0_i32 = arith.constant 0 : i32
    %c0_i32_0 = arith.constant 0 : i32
    %c0_i32_1 = arith.constant 0 : i32
    return %arg0, %c0_i32, %c0_i32_0 : i32, i32, i32
  }
}

</mosaic_0001>

<llo_original>
// kernel: tpu_custom_call.1
$region0: #{tpu_custom_call.1}
  #allocation0 [shape = 'u32[]', space=smem, size = 0x4, offset = 0x4, fixed_abs, tag = 'smem constant byte address 0x4 - core index']
  #allocation1 [shape = 'u32[144,128]{1,0:T(1,128)}', space=vmem, size = 0x12000, scoped, tag = 'internal scratch']
  %s0 = inlined_call_operand.hbm [shape: f32[2,8,32], index: 0, kind: input, shape index: {}]
  %s1 = inlined_call_operand.hbm [shape: f32[8,32], index: 1, kind: input, shape index: {}]
  %s2 = inlined_call_operand.hbm [shape: f32[2,8,32], index: 2, kind: input, shape index: {}]
  %s3 = inlined_call_operand.vmem [shape: f32[1,32], index: 3, kind: input, shape index: {}]
  %s4 = inlined_call_operand.vmem [shape: f32[1,32], index: 4, kind: input, shape index: {}]
  %s5 = inlined_call_operand.hbm [shape: bf16[2,8,32], index: 5, kind: output, shape index: {}]
  %s6 = sld [smem:[#allocation0]]
  $region65: #{tpu_custom_call.1} parent=0
    _
  %s8 = ssub.s32 1, %s6
  %s9 = scalar_select 0, %s8, %s6
  $region1: #{tpu_custom_call.1} parent=0
    #allocation2 [shape = 'u8[8192]{0}', space=vmem, size = 0x2000, scoped, tag = 'input window, operand 0']
    #allocation3 [shape = 's32[2]{0}', space=sflag, size = 0x8, scoped, tag = 'scoped memory for tpu_custom_call.1']
    #allocation4 [shape = 's32[2]{0}', space=sflag, size = 0x8, scoped, tag = 'scoped memory for tpu_custom_call.1']
    #allocation5 [shape = 'u8[4096]{0}', space=vmem, size = 0x1000, scoped, tag = 'input window, operand 1, single buffered']
    #allocation6 [shape = 's32[1]{0}', space=sflag, size = 0x4, scoped, tag = 'scoped memory for tpu_custom_call.1']
    #allocation7 [shape = 'u8[8192]{0}', space=vmem, size = 0x2000, scoped, tag = 'input window, operand 2']
    #allocation8 [shape = 'u8[4096]{0}', space=vmem, size = 0x1000, scoped, tag = 'output window, operand 0']
    %10 = vsyncpa [#allocation3], 0
    %s11 = scalar_lea.sflag [#allocation3], 1
    %12 = vsyncpa %s11, 0
    %13 = vsyncpa [#allocation6], 0
    %14 = vsyncpa [#allocation4], 0
    %s15 = scalar_lea.sflag [#allocation4], 1
    %16 = vsyncpa %s15, 0
    loop: start=0, step=1, limit=4
    $region2: #{tpu_custom_call.1} parent=1 // loop_pre_header
      _
    $region3: #{tpu_custom_call.1} parent=1 // loop_header
      %s18 = sphi 0, %s22
      %p19 = scmp.ge.s32.totalorder %s18, 4
      %s28 = sphi 0, %s30
      %s31 = sphi 0, %s28
      %s32 = sphi 0, %s31
      %s48 = sphi 0, %s32
      %s52 = sphi 0, %s52
      %s54 = sphi 0, %s52
      %s55 = sphi 0, %s54
      %s69 = sphi 0, %s55
      %s75 = sphi 0, %s77
      %s78 = sphi 0, %s75
      %s79 = sphi 0, %s78
      %s95 = sphi 0, %s79
      %s99 = sphi 0, %s99
      %s101 = sphi 0, %s99
      %s102 = sphi 0, %s101
      %s116 = sphi 0, %s102
      %s120 = sphi 0, %s120
      %s122 = sphi 0, %s120
      %s123 = sphi 0, %s122
      %s137 = sphi 0, %s123
      %s143 = sphi 0, %s145
      %s146 = sphi 0, %s143
      %s147 = sphi 0, %s146
      %s163 = sphi 0, %s147
    $region4: #{tpu_custom_call.1} parent=1 // loop_header_branch
      %21 = sbr.rel (%p19) target = $region8
    $region5: #{tpu_custom_call.1} parent=1 // loop_body
      %s23 = ssub.s32 %s18, 1
      %s24 = ssub.s32 %s18, 2
      %s25 = sadd.s32 %s18, 1
      %s26 = ssub.s32 %s18, %s25
      %p27 = scmp.eq.s32.totalorder %s26, 0
      %s29 = sadd.s32 %s28, 1
      %s30 = scalar_select %p27, %s28, %s29
      %p33 = pneg %p27
      %p34 = scmp.eq.s32.totalorder %s18, 1
      %p35 = por %p33, %p34
      %p36 = scmp.ne.s32.totalorder %s28, %s31
      %p37 = scmp.eq.s32.totalorder %s18, 0
      %p38 = por %p36, %p37
      %p39 = scmp.ne.s32.totalorder %s28, %s31
      %p40 = scmp.eq.s32.totalorder %s23, 1
      %p41 = por %p39, %p40
      %p42 = scmp.ne.s32.totalorder %s31, %s32
      %p43 = scmp.eq.s32.totalorder %s23, 0
      %p44 = por %p42, %p43
      %p45 = scmp.ne.s32.totalorder %s31, %s32
      %p46 = scmp.eq.s32.totalorder %s24, 1
      %p47 = por %p45, %p46
      %p49 = scmp.ne.s32.totalorder %s32, %s48
      %p50 = scmp.eq.s32.totalorder %s24, 0
      %p51 = por %p49, %p50
      %s53 = sadd.s32 %s52, 1
      %p56 = scmp.eq.s32.totalorder %s18, 1
      %p57 = scmp.ne.s32.totalorder %s52, %s54
      %p58 = scmp.eq.s32.totalorder %s18, 0
      %p59 = por %p57, %p58
      %p60 = scmp.ne.s32.totalorder %s52, %s54
      %p61 = scmp.eq.s32.totalorder %s23, 1
      %p62 = por %p60, %p61
      %p63 = scmp.ne.s32.totalorder %s54, %s55
      %p64 = scmp.eq.s32.totalorder %s23, 0
      %p65 = por %p63, %p64
      %p66 = scmp.ne.s32.totalorder %s54, %s55
      %p67 = scmp.eq.s32.totalorder %s24, 1
      %p68 = por %p66, %p67
      %p70 = scmp.ne.s32.totalorder %s55, %s69
      %p71 = scmp.eq.s32.totalorder %s24, 0
      %p72 = por %p70, %p71
      %s73 = ssub.s32 %s18, %s25
      %p74 = scmp.eq.s32.totalorder %s73, 0
      %s76 = sadd.s32 %s75, 1
      %s77 = scalar_select %p74, %s75, %s76
      %p80 = pneg %p74
      %p81 = scmp.eq.s32.totalorder %s18, 1
      %p82 = por %p80, %p81
      %p83 = scmp.ne.s32.totalorder %s75, %s78
      %p84 = scmp.eq.s32.totalorder %s18, 0
      %p85 = por %p83, %p84
      %p86 = scmp.ne.s32.totalorder %s75, %s78
      %p87 = scmp.eq.s32.totalorder %s23, 1
      %p88 = por %p86, %p87
      %p89 = scmp.ne.s32.totalorder %s78, %s79
      %p90 = scmp.eq.s32.totalorder %s23, 0
      %p91 = por %p89, %p90
      %p92 = scmp.ne.s32.totalorder %s78, %s79
      %p93 = scmp.eq.s32.totalorder %s24, 1
      %p94 = por %p92, %p93
      %p96 = scmp.ne.s32.totalorder %s79, %s95
      %p97 = scmp.eq.s32.totalorder %s24, 0
      %p98 = por %p96, %p97
      %s100 = sadd.s32 %s99, 1
      %p103 = scmp.eq.s32.totalorder %s18, 1
      %p104 = scmp.ne.s32.totalorder %s99, %s101
      %p105 = scmp.eq.s32.totalorder %s18, 0
      %p106 = por %p104, %p105
      %p107 = scmp.ne.s32.totalorder %s99, %s101
      %p108 = scmp.eq.s32.totalorder %s23, 1
      %p109 = por %p107, %p108
      %p110 = scmp.ne.s32.totalorder %s101, %s102
      %p111 = scmp.eq.s32.totalorder %s23, 0
      %p112 = por %p110, %p111
      %p113 = scmp.ne.s32.totalorder %s101, %s102
      %p114 = scmp.eq.s32.totalorder %s24, 1
      %p115 = por %p113, %p114
      %p117 = scmp.ne.s32.totalorder %s102, %s116
      %p118 = scmp.eq.s32.totalorder %s24, 0
      %p119 = por %p117, %p118
      %s121 = sadd.s32 %s120, 1
      %p124 = scmp.eq.s32.totalorder %s18, 1
      %p125 = scmp.ne.s32.totalorder %s120, %s122
      %p126 = scmp.eq.s32.totalorder %s18, 0
      %p127 = por %p125, %p126
      %p128 = scmp.ne.s32.totalorder %s120, %s122
      %p129 = scmp.eq.s32.totalorder %s23, 1
      %p130 = por %p128, %p129
      %p131 = scmp.ne.s32.totalorder %s122, %s123
      %p132 = scmp.eq.s32.totalorder %s23, 0
      %p133 = por %p131, %p132
      %p134 = scmp.ne.s32.totalorder %s122, %s123
      %p135 = scmp.eq.s32.totalorder %s24, 1
      %p136 = por %p134, %p135
      %p138 = scmp.ne.s32.totalorder %s123, %s137
      %p139 = scmp.eq.s32.totalorder %s24, 0
      %p140 = por %p138, %p139
      %s141 = ssub.s32 %s18, %s25
      %p142 = scmp.eq.s32.totalorder %s141, 0
      %s144 = sadd.s32 %s143, 1
      %s145 = scalar_select %p142, %s143, %s144
      %p148 = pneg %p142
      %p149 = scmp.eq.s32.totalorder %s18, 1
      %p150 = por %p148, %p149
      %p151 = scmp.ne.s32.totalorder %s143, %s146
      %p152 = scmp.eq.s32.totalorder %s18, 0
      %p153 = por %p151, %p152
      %p154 = scmp.ne.s32.totalorder %s143, %s146
      %p155 = scmp.eq.s32.totalorder %s23, 1
      %p156 = por %p154, %p155
      %p157 = scmp.ne.s32.totalorder %s146, %s147
      %p158 = scmp.eq.s32.totalorder %s23, 0
      %p159 = por %p157, %p158
      %p160 = scmp.ne.s32.totalorder %s146, %s147
      %p161 = scmp.eq.s32.totalorder %s24, 1
      %p162 = por %p160, %p161
      %p164 = scmp.ne.s32.totalorder %s147, %s163
      %p165 = scmp.eq.s32.totalorder %s24, 0
      %p166 = por %p164, %p165
      %p167 = scmp.le.s32.totalorder 1, %s18
      %p168 = scmp.lt.s32.totalorder %s18, 3
      %p169 = pnand %p167, %p168
      %p170 = pneg %p169
      // Predicated region
      $region9: #{tpu_custom_call.1} parent=5 // pred_check
        _
      $region10: #{tpu_custom_call.1} parent=5 // pred_check_branch
        %172 = sbr.rel (%p169) target = $region12
      $region11: #{tpu_custom_call.1} parent=5 // pred_region
        %s173 = ssub.s32 %s18, 1
        // Predicated region
        $region13: #{tpu_custom_call.1} parent=11 // pred_check
          %p174 = pneg %p65
        $region14: #{tpu_custom_call.1} parent=11 // pred_check_branch
          %176 = sbr.rel (%p174) target = $region16
        $region15: #{tpu_custom_call.1} parent=11 // pred_region
          %s178 = ssub.s32 128, 128
          %179 = vsyncadd [#allocation6], %s178
          %s181 = sshll.u32 [#allocation5], 4
          %s182 = int_to_ptr.vmem [resolvable:$true] %s181
          %184 = dma.hbm_to_vmem [thread:$0]  %s1, 128, %s182, [#allocation6]
        $region16: #{tpu_custom_call.1} parent=11 // pred_fallthru
          _
        // Predicated region
        $region17: #{tpu_custom_call.1} parent=11 // pred_check
          %p185 = pneg %p112
        $region18: #{tpu_custom_call.1} parent=11 // pred_check_branch
          %187 = sbr.rel (%p185) target = $region20
        $region19: #{tpu_custom_call.1} parent=11 // pred_region
          _
        $region20: #{tpu_custom_call.1} parent=11 // pred_fallthru
          _
        // Predicated region
        $region21: #{tpu_custom_call.1} parent=11 // pred_check
          %p188 = pneg %p133
        $region22: #{tpu_custom_call.1} parent=11 // pred_check_branch
          %190 = sbr.rel (%p188) target = $region24
        $region23: #{tpu_custom_call.1} parent=11 // pred_region
          _
        $region24: #{tpu_custom_call.1} parent=11 // pred_fallthru
          _
      $region12: #{tpu_custom_call.1} parent=5 // pred_fallthru
        _
      %p191 = scmp.lt.s32.totalorder %s18, 2
      // Predicated region
      $region25: #{tpu_custom_call.1} parent=5 // pred_check
        %p192 = pneg %p191
      $region26: #{tpu_custom_call.1} parent=5 // pred_check_branch
        %194 = sbr.rel (%p192) target = $region28
      $region27: #{tpu_custom_call.1} parent=5 // pred_region
        // Predicated region
        $region29: #{tpu_custom_call.1} parent=27 // pred_check
          %p195 = pneg %p38
        $region30: #{tpu_custom_call.1} parent=27 // pred_check_branch
          %197 = sbr.rel (%p195) target = $region32
        $region31: #{tpu_custom_call.1} parent=27 // pred_region
          %s198 = sand.u32 %s18, 1
          %s199 = scalar_lea.sflag [#allocation3], %s198
          %s200 = sand.u32 %s28, 1
          %s201 = smul.addr %s200, 8
          %s202 = scalar_lea.vmem [#allocation2], %s201
          %s204 = ssub.s32 128, 128
          %205 = vsyncadd %s199, %s204
          %s206 = smul.addr %s18, 128
          %s207 = scalar_lea.hbm %s0, %s206
          %s209 = sshll.u32 %s202, 4
          %s210 = int_to_ptr.vmem [resolvable:$true] %s209
          %212 = dma.hbm_to_vmem [thread:$0]  %s207, 128, %s210, %s199
        $region32: #{tpu_custom_call.1} parent=27 // pred_fallthru
          _
        // Predicated region
        $region33: #{tpu_custom_call.1} parent=27 // pred_check
          %p213 = pneg %p85
        $region34: #{tpu_custom_call.1} parent=27 // pred_check_branch
          %215 = sbr.rel (%p213) target = $region36
        $region35: #{tpu_custom_call.1} parent=27 // pred_region
          %s216 = sand.u32 %s18, 1
          %s217 = scalar_lea.sflag [#allocation3], %s216
          %s218 = sand.u32 %s75, 1
          %s219 = smul.addr %s218, 8
          %s220 = scalar_lea.vmem [#allocation7], %s219
          %s222 = ssub.s32 128, 128
          %223 = vsyncadd %s217, %s222
          %s224 = smul.addr %s18, 128
          %s225 = scalar_lea.hbm %s2, %s224
          %s227 = sshll.u32 %s220, 4
          %s228 = int_to_ptr.vmem [resolvable:$true] %s227
          %230 = dma.hbm_to_vmem [thread:$0]  %s225, 128, %s228, %s217
        $region36: #{tpu_custom_call.1} parent=27 // pred_fallthru
          _
      $region28: #{tpu_custom_call.1} parent=5 // pred_fallthru
        _
      %p231 = scmp.le.s32.totalorder 1, %s18
      %p232 = scmp.lt.s32.totalorder %s18, 3
      %p233 = pnand %p231, %p232
      %p234 = pneg %p233
      // Predicated region
      $region37: #{tpu_custom_call.1} parent=5 // pred_check
        _
      $region38: #{tpu_custom_call.1} parent=5 // pred_check_branch
        %236 = sbr.rel (%p233) target = $region40
      $region39: #{tpu_custom_call.1} parent=5 // pred_region
        %s237 = ssub.s32 %s18, 1
        %s238 = sand.u32 %s23, 1
        %s239 = scalar_lea.sflag [#allocation3], %s238
        %s240 = sand.u32 %s31, 1
        %s241 = smul.addr %s240, 8
        %s242 = scalar_lea.vmem [#allocation2], %s241
        // Predicated region
        $region41: #{tpu_custom_call.1} parent=39 // pred_check
          %p243 = pneg %p44
        $region42: #{tpu_custom_call.1} parent=39 // pred_check_branch
          %245 = sbr.rel (%p243) target = $region44
        $region43: #{tpu_custom_call.1} parent=39 // pred_region
          %246 = dma.done %s239, 128
        $region44: #{tpu_custom_call.1} parent=39 // pred_fallthru
          _
        // Predicated region
        $region45: #{tpu_custom_call.1} parent=39 // pred_check
          %p247 = pneg %p65
        $region46: #{tpu_custom_call.1} parent=39 // pred_check_branch
          %249 = sbr.rel (%p247) target = $region48
        $region47: #{tpu_custom_call.1} parent=39 // pred_region
          %250 = dma.done [#allocation6], 128
        $region48: #{tpu_custom_call.1} parent=39 // pred_fallthru
          _
        %s251 = sand.u32 %s23, 1
        %s252 = scalar_lea.sflag [#allocation3], %s251
        %s253 = sand.u32 %s78, 1
        %s254 = smul.addr %s253, 8
        %s255 = scalar_lea.vmem [#allocation7], %s254
        // Predicated region
        $region49: #{tpu_custom_call.1} parent=39 // pred_check
          %p256 = pneg %p91
        $region50: #{tpu_custom_call.1} parent=39 // pred_check_branch
          %258 = sbr.rel (%p256) target = $region52
        $region51: #{tpu_custom_call.1} parent=39 // pred_region
          %259 = dma.done %s252, 128
        $region52: #{tpu_custom_call.1} parent=39 // pred_fallthru
          _
        %s260 = sand.u32 %s23, 1
        %s261 = scalar_lea.sflag [#allocation3], %s260
        %s262 = sand.u32 %s31, 1
        %s263 = smul.addr %s262, 8
        %s264 = scalar_lea.vmem [#allocation2], %s263
        %p265 = pneg %p44
        %p266 = pneg %p41
        %p267 = pneg %p65
        %p268 = pneg %p62
        %s269 = sand.u32 %s23, 1
        %s270 = scalar_lea.sflag [#allocation3], %s269
        %s271 = sand.u32 %s78, 1
        %s272 = smul.addr %s271, 8
        %s273 = scalar_lea.vmem [#allocation7], %s272
        %p274 = pneg %p91
        %p275 = pneg %p88
        %p276 = pneg %p112
        %p277 = pneg %p109
        %p278 = pneg %p133
        %p279 = pneg %p130
        %p280 = pneg %p159
        %p281 = pneg %p156
        %s282 = sand.u32 %s146, 1
        %s283 = scalar_lea.sflag [#allocation4], %s282
        %s284 = sand.u32 %s146, 1
        %s285 = smul.addr %s284, 4
        %s286 = scalar_lea.vmem [#allocation8], %s285
        %v287 = vld [vmem:[%s242] sm:$0xff]
        %v288 = vld [vmem:[#allocation5] sm:$0xff]
        %v289 = vadd.f32 %v287, %v288
        %v290 = vld [vmem:[%s255] sm:$0xff]
        %v291 = vadd.f32 %v289, %v290
        %vm292 = vcmask 261120
        %v293 = vsel %vm292, %v291, 0.0
        %294 = vadd.xlane.f32.xlu0 %v293
        %v295 = vpop.xlane.xlu0 %294
        %v296 = vrcp.pop 32.0
        %v297 = vmul.f32 %v295, %v296
        %v298 = vsub.f32 %v291, %v297
        %v299 = vmul.f32 %v298, %v298
        %v300 = vsel %vm292, %v299, 0.0
        %301 = vadd.xlane.f32.xlu0 %v300
        %v302 = vpop.xlane.xlu0 %301
        %v303 = vmul.f32 %v302, %v296
        %v304 = vadd.f32 %v303, 1e-12
        %v305 = vrsqrt.pop %v304
        %v306 = vmul.f32 %v298, %v305
        %v307 = vld [vmem:[%s3] sm:$0x1]
        %v309 = vlaneseq
        %v310 = vshrl.u32 %v309, 7
        %v311 = vsub.s32 0, %v310
        %v312 = vrot.slane %v307, %v311
        %v314 = vmul.f32 %v306, %v312
        %v315 = vld [vmem:[%s4] sm:$0x1]
        %v317 = vlaneseq
        %v318 = vshrl.u32 %v317, 7
        %v319 = vsub.s32 0, %v318
        %v320 = vrot.slane %v315, %v319
        %v322 = vadd.f32 %v314, %v320
        %v323 = vpack.c.bf16 %v322, %v322
        %vm324 = vcmask 257024
        %325 = vst.msk [vmem:[%s286] sm:$0xf] %vm324, %v323
        %s326 = sand.u32 %s146, 1
        %s327 = scalar_lea.sflag [#allocation4], %s326
        %s328 = sand.u32 %s146, 1
        %s329 = smul.addr %s328, 4
        %s330 = scalar_lea.vmem [#allocation8], %s329
        // Predicated region
        $region53: #{tpu_custom_call.1} parent=39 // pred_check
          %p331 = pneg %p156
        $region54: #{tpu_custom_call.1} parent=39 // pred_check_branch
          %333 = sbr.rel (%p331) target = $region56
        $region55: #{tpu_custom_call.1} parent=39 // pred_region
          %s335 = ssub.s32 64, 64
          %336 = vsyncadd %s327, %s335
          %s337 = smul.addr %s23, 64
          %s338 = scalar_lea.hbm %s5, %s337
          %s340 = sshll.u32 %s330, 4
          %s341 = int_to_ptr.vmem [resolvable:$true] %s340
          %343 = dma.vmem_to_hbm [thread:$0]  %s341, 64, %s338, %s327
        $region56: #{tpu_custom_call.1} parent=39 // pred_fallthru
          _
      $region40: #{tpu_custom_call.1} parent=5 // pred_fallthru
        _
      %p344 = scmp.le.s32.totalorder 2, %s18
      // Predicated region
      $region57: #{tpu_custom_call.1} parent=5 // pred_check
        %p345 = pneg %p344
      $region58: #{tpu_custom_call.1} parent=5 // pred_check_branch
        %347 = sbr.rel (%p345) target = $region60
      $region59: #{tpu_custom_call.1} parent=5 // pred_region
        %s348 = ssub.s32 %s18, 2
        // Predicated region
        $region61: #{tpu_custom_call.1} parent=59 // pred_check
          %p349 = pneg %p162
        $region62: #{tpu_custom_call.1} parent=59 // pred_check_branch
          %351 = sbr.rel (%p349) target = $region64
        $region63: #{tpu_custom_call.1} parent=59 // pred_region
          %s352 = sand.u32 %s147, 1
          %s353 = scalar_lea.sflag [#allocation4], %s352
          %s354 = sand.u32 %s147, 1
          %s355 = smul.addr %s354, 4
          %s356 = scalar_lea.vmem [#allocation8], %s355
          %357 = dma.done %s353, 64
        $region64: #{tpu_custom_call.1} parent=59 // pred_fallthru
          _
      $region60: #{tpu_custom_call.1} parent=5 // pred_fallthru
        _
    $region6: #{tpu_custom_call.1} parent=1 // loop_footer
      %s22 = sadd.s32 1, %s18
    $region7: #{tpu_custom_call.1} parent=1 // loop_footer_branch
      %17 = sbr.rel target = $region3
    $region8: #{tpu_custom_call.1} parent=1 // loop_exit
      _
    %358 = vsyncpa [#allocation3], 1
    %s359 = scalar_lea.sflag [#allocation3], 1
    %360 = vsyncpa %s359, 1
    %361 = vsyncpa [#allocation6], 1
    %362 = vsyncpa [#allocation4], 1
    %s363 = scalar_lea.sflag [#allocation4], 1
    %364 = vsyncpa %s363, 1

</llo_original>
